<compile_context>
chip_gen: v5e
topology: v5e:2x2
jax: 0.10.0
libtpu: 0.0.40
codegen_flags: <defaults>
</compile_context>

<pallas_src>
import jax
import jax.numpy as jnp
from jax.experimental import pallas as pl
from jax.experimental.pallas import tpu as pltpu

IN_DIM = 28 * 28        # 784 (multiple of 8; used as the full last block dim)
HID = 64                # logical hidden width
HID_P = 128             # lane-dense padded hidden width
NCLS = 10               # logical number of classes
NCLS_P = 128            # lane-dense padded class width
NEG_BIAS = -1e30        # bias for padded class columns -> exp() underflows to 0
TILE_B_MAX = 2048       # batch tile (x tile in bf16 = 3.1 MiB, fits all chips)


def _round_up(v, m):
    return (v + m - 1) // m * m


def mlp_kernel(x_ref, w1_ref, b1_ref, w2_ref, b2_ref,
               w3_ref, b3_ref, w4_ref, b4_ref, o_ref):
    # fc1 + ReLU  (bf16 operands on the MXU, f32 accumulation)
    h = jnp.dot(x_ref[...], w1_ref[...],
                preferred_element_type=jnp.float32) + b1_ref[...]
    h = jnp.maximum(h, 0.0)
    # fc2 + ReLU
    h = jnp.dot(h.astype(jnp.bfloat16), w2_ref[...],
                preferred_element_type=jnp.float32) + b2_ref[...]
    h = jnp.maximum(h, 0.0)
    # fc3 + ReLU
    h = jnp.dot(h.astype(jnp.bfloat16), w3_ref[...],
                preferred_element_type=jnp.float32) + b3_ref[...]
    h = jnp.maximum(h, 0.0)
    # fc4 (logits). Padded class columns have zero weights and a -1e30 bias,
    # so they contribute nothing to max / sum-exp below.
    logits = jnp.dot(h.astype(jnp.bfloat16), w4_ref[...],
                     preferred_element_type=jnp.float32) + b4_ref[...]
    # numerically stable log_softmax over the lane-dense (128-wide) class dim
    m = jnp.max(logits, axis=-1, keepdims=True)
    lse = m + jnp.log(jnp.sum(jnp.exp(logits - m), axis=-1, keepdims=True))
    o_ref[...] = logits - lse


@jax.jit
def net_forward(x, params):
    """x: (B, 784) float32.  params: unpadded PyTorch-layout (in, out) weights
    and (1, out) biases.  Returns (B, 10) float32 log-probabilities."""
    w1, b1, w2, b2, w3, b3, w4, b4 = params
    B = x.shape[0]

    # ---- lane-dense padding of weights/biases (hidden 64->128, cls 10->128) --
    w1p = jnp.pad(w1, ((0, 0), (0, HID_P - HID))).astype(jnp.bfloat16)
    w2p = jnp.pad(w2, ((0, HID_P - HID), (0, HID_P - HID))).astype(jnp.bfloat16)
    w3p = jnp.pad(w3, ((0, HID_P - HID), (0, HID_P - HID))).astype(jnp.bfloat16)
    w4p = jnp.pad(w4, ((0, HID_P - HID), (0, NCLS_P - NCLS))).astype(jnp.bfloat16)
    b1p = jnp.pad(b1, ((0, 0), (0, HID_P - HID)))                       # f32, 0s
    b2p = jnp.pad(b2, ((0, 0), (0, HID_P - HID)))
    b3p = jnp.pad(b3, ((0, 0), (0, HID_P - HID)))
    b4p = jnp.pad(b4, ((0, 0), (0, NCLS_P - NCLS)),
                  constant_values=NEG_BIAS)                              # f32

    # ---- batch tiling --------------------------------------------------------
    tile_b = min(TILE_B_MAX, _round_up(B, 8))
    b_pad = _round_up(B, tile_b)
    xp = x if b_pad == B else jnp.pad(x, ((0, b_pad - B), (0, 0)))
    xp = xp.astype(jnp.bfloat16)
    grid = (b_pad // tile_b,)

    def const_spec(shape):
        # Same block every grid step -> stays resident in VMEM.
        return pl.BlockSpec(shape, lambda i: (0, 0))

    flops = 2 * b_pad * (IN_DIM * HID_P + 2 * HID_P * HID_P + HID_P * NCLS_P)
    bytes_accessed = (
        b_pad * IN_DIM * 2                                   # x (bf16)
        + (IN_DIM * HID_P + 2 * HID_P * HID_P + HID_P * NCLS_P) * 2  # weights
        + (3 * HID_P + NCLS_P) * 4                           # biases (f32)
        + b_pad * NCLS_P * 4)                                # output (f32)

    out = pl.pallas_call(
        mlp_kernel,
        out_shape=jax.ShapeDtypeStruct((b_pad, NCLS_P), jnp.float32),
        grid=grid,
        in_specs=[
            pl.BlockSpec((tile_b, IN_DIM), lambda i: (i, 0)),   # x: pipelined tiles
            const_spec((IN_DIM, HID_P)), const_spec((1, HID_P)),
            const_spec((HID_P, HID_P)), const_spec((1, HID_P)),
            const_spec((HID_P, HID_P)), const_spec((1, HID_P)),
            const_spec((HID_P, NCLS_P)), const_spec((1, NCLS_P)),
        ],
        out_specs=pl.BlockSpec((tile_b, NCLS_P), lambda i: (i, 0)),
        compiler_params=pltpu.CompilerParams(
            dimension_semantics=("parallel",)),
        cost_estimate=pl.CostEstimate(
            flops=flops,
            transcendentals=b_pad * (NCLS_P + 1),
            bytes_accessed=bytes_accessed),
    )(xp, w1p, b1p, w2p, b2p, w3p, b3p, w4p, b4p)

    return out[:B, :NCLS]


def net_forward_ref(x, params):
    """Pure-JAX f32 reference (matches the PyTorch module)."""
    w1, b1, w2, b2, w3, b3, w4, b4 = params
    h = jnp.maximum(x @ w1 + b1, 0.0)
    h = jnp.maximum(h @ w2 + b2, 0.0)
    h = jnp.maximum(h @ w3 + b3, 0.0)
    logits = h @ w4 + b4
    return jax.nn.log_softmax(logits, axis=-1)


def init_params(key):
    """Deterministic init matching PyTorch nn.Linear default:
    U(-1/sqrt(fan_in), 1/sqrt(fan_in)) for weights and biases."""
    dims = [(IN_DIM, HID), (HID, HID), (HID, HID), (HID, NCLS)]
    params = []
    for (fan_in, fan_out) in dims:
        key, kw, kb = jax.random.split(key, 3)
        bound = 1.0 / jnp.sqrt(fan_in)
        w = jax.random.uniform(kw, (fan_in, fan_out), jnp.float32,
                               minval=-bound, maxval=bound)
        b = jax.random.uniform(kb, (1, fan_out), jnp.float32,
                               minval=-bound, maxval=bound)
        params.extend([w, b])
    return tuple(params)


if __name__ == "__main__":
    key = jax.random.PRNGKey(0)
    key, kx = jax.random.split(key)

    B = 8
    x = jax.random.normal(kx, (B, IN_DIM), jnp.float32)
    params = init_params(key)

    out = net_forward(x, params)
    jax.block_until_ready(out)

    # Sanity: shape, rows sum to 1 in prob space, close to f32 reference.
    assert out.shape == (B, NCLS)
    row_sums = jnp.sum(jnp.exp(out), axis=1)
    assert bool(jnp.all(jnp.abs(row_sums - 1.0) < 1e-4))
    ref = net_forward_ref(x, params)
    assert bool(jnp.max(jnp.abs(out - ref)) < 0.1)  # bf16-matmul tolerance

    print("KERNEL_OK")
</pallas_src>

<mosaic_0001>
module attributes {stable_mosaic.version = 11 : i64} {
  func.func @mlp_kernel(%arg0: i32, %arg1: memref<8x784xbf16, #tpu.memory_space<vmem>>, %arg2: memref<784x128xbf16, #tpu.memory_space<vmem>>, %arg3: memref<1x128xf32, #tpu.memory_space<vmem>>, %arg4: memref<128x128xbf16, #tpu.memory_space<vmem>>, %arg5: memref<1x128xf32, #tpu.memory_space<vmem>>, %arg6: memref<128x128xbf16, #tpu.memory_space<vmem>>, %arg7: memref<1x128xf32, #tpu.memory_space<vmem>>, %arg8: memref<128x128xbf16, #tpu.memory_space<vmem>>, %arg9: memref<1x128xf32, #tpu.memory_space<vmem>>, %arg10: memref<8x128xf32, #tpu.memory_space<vmem>>) attributes {dimension_semantics = [#tpu.dimension_semantics<parallel>], iteration_bounds = array<i64: 1>, scalar_prefetch = 0 : i64, scratch_operands = 0 : i64, tpu.core_type = #tpu.core_type<tc>, window_params = [{transform_indices = @transform_0, window_bounds = array<i64: 8, 784>}, {pipeline_mode = #tpu.pipeline_mode<synchronous>, transform_indices = @transform_1, window_bounds = array<i64: 784, 128>}, {pipeline_mode = #tpu.pipeline_mode<synchronous>, transform_indices = @transform_2, window_bounds = array<i64: 1, 128>}, {pipeline_mode = #tpu.pipeline_mode<synchronous>, transform_indices = @transform_3, window_bounds = array<i64: 128, 128>}, {pipeline_mode = #tpu.pipeline_mode<synchronous>, transform_indices = @transform_4, window_bounds = array<i64: 1, 128>}, {pipeline_mode = #tpu.pipeline_mode<synchronous>, transform_indices = @transform_5, window_bounds = array<i64: 128, 128>}, {pipeline_mode = #tpu.pipeline_mode<synchronous>, transform_indices = @transform_6, window_bounds = array<i64: 1, 128>}, {pipeline_mode = #tpu.pipeline_mode<synchronous>, transform_indices = @transform_7, window_bounds = array<i64: 128, 128>}, {pipeline_mode = #tpu.pipeline_mode<synchronous>, transform_indices = @transform_8, window_bounds = array<i64: 1, 128>}, {transform_indices = @transform_9, window_bounds = array<i64: 8, 128>}]} {
    %c0 = arith.constant 0 : index
    %c0_0 = arith.constant 0 : index
    %0 = vector.load %arg1[%c0, %c0_0] : memref<8x784xbf16, #tpu.memory_space<vmem>>, vector<8x784xbf16>
    %c0_1 = arith.constant 0 : index
    %c0_2 = arith.constant 0 : index
    %1 = vector.load %arg2[%c0_1, %c0_2] : memref<784x128xbf16, #tpu.memory_space<vmem>>, vector<784x128xbf16>
    %cst = arith.constant dense<0.000000e+00> : vector<8x128xf32>
    %2 = tpu.matmul %0, %1, %cst {dimension_numbers = #tpu.dot_dimension_numbers<[1], [0], [0], [1], [0, 0, 1, 1], [], []>} : vector<8x784xbf16>, vector<784x128xbf16>, vector<8x128xf32> -> vector<8x128xf32>
    %c0_3 = arith.constant 0 : index
    %c0_4 = arith.constant 0 : index
    %3 = vector.load %arg3[%c0_3, %c0_4] : memref<1x128xf32, #tpu.memory_space<vmem>>, vector<1x128xf32>
    %4 = vector.broadcast %3 : vector<1x128xf32> to vector<8x128xf32>
    %5 = arith.addf %2, %4 : vector<8x128xf32>
    %cst_5 = arith.constant 0.000000e+00 : f32
    %6 = vector.broadcast %cst_5 : f32 to vector<8x128xf32>
    %7 = arith.maximumf %5, %6 : vector<8x128xf32>
    %8 = arith.truncf %7 : vector<8x128xf32> to vector<8x128xbf16>
    %c0_6 = arith.constant 0 : index
    %c0_7 = arith.constant 0 : index
    %9 = vector.load %arg4[%c0_6, %c0_7] : memref<128x128xbf16, #tpu.memory_space<vmem>>, vector<128x128xbf16>
    %cst_8 = arith.constant dense<0.000000e+00> : vector<8x128xf32>
    %10 = tpu.matmul %8, %9, %cst_8 {dimension_numbers = #tpu.dot_dimension_numbers<[1], [0], [0], [1], [0, 0, 1, 1], [], []>} : vector<8x128xbf16>, vector<128x128xbf16>, vector<8x128xf32> -> vector<8x128xf32>
    %c0_9 = arith.constant 0 : index
    %c0_10 = arith.constant 0 : index
    %11 = vector.load %arg5[%c0_9, %c0_10] : memref<1x128xf32, #tpu.memory_space<vmem>>, vector<1x128xf32>
    %12 = vector.broadcast %11 : vector<1x128xf32> to vector<8x128xf32>
    %13 = arith.addf %10, %12 : vector<8x128xf32>
    %cst_11 = arith.constant 0.000000e+00 : f32
    %14 = vector.broadcast %cst_11 : f32 to vector<8x128xf32>
    %15 = arith.maximumf %13, %14 : vector<8x128xf32>
    %16 = arith.truncf %15 : vector<8x128xf32> to vector<8x128xbf16>
    %c0_12 = arith.constant 0 : index
    %c0_13 = arith.constant 0 : index
    %17 = vector.load %arg6[%c0_12, %c0_13] : memref<128x128xbf16, #tpu.memory_space<vmem>>, vector<128x128xbf16>
    %cst_14 = arith.constant dense<0.000000e+00> : vector<8x128xf32>
    %18 = tpu.matmul %16, %17, %cst_14 {dimension_numbers = #tpu.dot_dimension_numbers<[1], [0], [0], [1], [0, 0, 1, 1], [], []>} : vector<8x128xbf16>, vector<128x128xbf16>, vector<8x128xf32> -> vector<8x128xf32>
    %c0_15 = arith.constant 0 : index
    %c0_16 = arith.constant 0 : index
    %19 = vector.load %arg7[%c0_15, %c0_16] : memref<1x128xf32, #tpu.memory_space<vmem>>, vector<1x128xf32>
    %20 = vector.broadcast %19 : vector<1x128xf32> to vector<8x128xf32>
    %21 = arith.addf %18, %20 : vector<8x128xf32>
    %cst_17 = arith.constant 0.000000e+00 : f32
    %22 = vector.broadcast %cst_17 : f32 to vector<8x128xf32>
    %23 = arith.maximumf %21, %22 : vector<8x128xf32>
    %24 = arith.truncf %23 : vector<8x128xf32> to vector<8x128xbf16>
    %c0_18 = arith.constant 0 : index
    %c0_19 = arith.constant 0 : index
    %25 = vector.load %arg8[%c0_18, %c0_19] : memref<128x128xbf16, #tpu.memory_space<vmem>>, vector<128x128xbf16>
    %cst_20 = arith.constant dense<0.000000e+00> : vector<8x128xf32>
    %26 = tpu.matmul %24, %25, %cst_20 {dimension_numbers = #tpu.dot_dimension_numbers<[1], [0], [0], [1], [0, 0, 1, 1], [], []>} : vector<8x128xbf16>, vector<128x128xbf16>, vector<8x128xf32> -> vector<8x128xf32>
    %c0_21 = arith.constant 0 : index
    %c0_22 = arith.constant 0 : index
    %27 = vector.load %arg9[%c0_21, %c0_22] : memref<1x128xf32, #tpu.memory_space<vmem>>, vector<1x128xf32>
    %28 = vector.broadcast %27 : vector<1x128xf32> to vector<8x128xf32>
    %29 = arith.addf %26, %28 : vector<8x128xf32>
    %cst_23 = arith.constant dense<0xFF800000> : vector<8xf32>
    %30 = vector.multi_reduction <maximumf>, %29, %cst_23 [1] : vector<8x128xf32> to vector<8xf32>
    %31 = vector.shape_cast %30 : vector<8xf32> to vector<8x1xf32>
    %32 = vector.broadcast %31 : vector<8x1xf32> to vector<8x128xf32>
    %33 = arith.subf %29, %32 : vector<8x128xf32>
    %34 = math.exp %33 : vector<8x128xf32>
    %cst_24 = arith.constant dense<0.000000e+00> : vector<8xf32>
    %35 = vector.multi_reduction <add>, %34, %cst_24 [1] : vector<8x128xf32> to vector<8xf32>
    %36 = vector.shape_cast %35 : vector<8xf32> to vector<8x1xf32>
    %37 = math.log %36 : vector<8x1xf32>
    %38 = arith.addf %31, %37 : vector<8x1xf32>
    %39 = vector.broadcast %38 : vector<8x1xf32> to vector<8x128xf32>
    %40 = arith.subf %29, %39 : vector<8x128xf32>
    %c0_25 = arith.constant 0 : index
    %c0_26 = arith.constant 0 : index
    %41 = vector.load %arg10[%c0_25, %c0_26] : memref<8x128xf32, #tpu.memory_space<vmem>>, vector<8x128xf32>
    tpu.vector_store %arg10[%c0_25, %c0_26], %40 {strides = array<i32>} : memref<8x128xf32, #tpu.memory_space<vmem>>, vector<8x128xf32>,
    return
  }
  func.func @transform_0(%arg0: i32) -> (i32, i32) {
    %c0_i32 = arith.constant 0 : i32
    %c0_i32_0 = arith.constant 0 : i32
    return %arg0, %c0_i32 : i32, i32
  }
  func.func @transform_1(%arg0: i32) -> (i32, i32) {
    %c0_i32 = arith.constant 0 : i32
    %c0_i32_0 = arith.constant 0 : i32
    %c0_i32_1 = arith.constant 0 : i32
    return %c0_i32, %c0_i32_0 : i32, i32
  }
  func.func @transform_2(%arg0: i32) -> (i32, i32) {
    %c0_i32 = arith.constant 0 : i32
    %c0_i32_0 = arith.constant 0 : i32
    %c0_i32_1 = arith.constant 0 : i32
    return %c0_i32, %c0_i32_0 : i32, i32
  }
  func.func @transform_3(%arg0: i32) -> (i32, i32) {
    %c0_i32 = arith.constant 0 : i32
    %c0_i32_0 = arith.constant 0 : i32
    %c0_i32_1 = arith.constant 0 : i32
    return %c0_i32, %c0_i32_0 : i32, i32
  }
  func.func @transform_4(%arg0: i32) -> (i32, i32) {
    %c0_i32 = arith.constant 0 : i32
    %c0_i32_0 = arith.constant 0 : i32
    %c0_i32_1 = arith.constant 0 : i32
    return %c0_i32, %c0_i32_0 : i32, i32
  }
  func.func @transform_5(%arg0: i32) -> (i32, i32) {
    %c0_i32 = arith.constant 0 : i32
    %c0_i32_0 = arith.constant 0 : i32
    %c0_i32_1 = arith.constant 0 : i32
    return %c0_i32, %c0_i32_0 : i32, i32
  }
  func.func @transform_6(%arg0: i32) -> (i32, i32) {
    %c0_i32 = arith.constant 0 : i32
    %c0_i32_0 = arith.constant 0 : i32
    %c0_i32_1 = arith.constant 0 : i32
    return %c0_i32, %c0_i32_0 : i32, i32
  }
  func.func @transform_7(%arg0: i32) -> (i32, i32) {
    %c0_i32 = arith.constant 0 : i32
    %c0_i32_0 = arith.constant 0 : i32
    %c0_i32_1 = arith.constant 0 : i32
    return %c0_i32, %c0_i32_0 : i32, i32
  }
  func.func @transform_8(%arg0: i32) -> (i32, i32) {
    %c0_i32 = arith.constant 0 : i32
    %c0_i32_0 = arith.constant 0 : i32
    %c0_i32_1 = arith.constant 0 : i32
    return %c0_i32, %c0_i32_0 : i32, i32
  }
  func.func @transform_9(%arg0: i32) -> (i32, i32) {
    %c0_i32 = arith.constant 0 : i32
    %c0_i32_0 = arith.constant 0 : i32
    return %arg0, %c0_i32 : i32, i32
  }
}

</mosaic_0001>

<llo_original>
// kernel: net_forward.1
$region0: #{net_forward.1}
  #allocation0 [shape = 'u32[]', space=smem, size = 0x4, offset = 0x4, fixed_abs, tag = 'smem constant byte address 0x4 - core index']
  #allocation1 [shape = 'u32[72,128]{1,0:T(1,128)}', space=vmem, size = 0x9000, scoped, tag = 'internal scratch']
  %s0 = inlined_call_operand.vmem [shape: bf16[8,784], index: 0, kind: input, shape index: {}]
  %s1 = inlined_call_operand.vmem [shape: bf16[784,128], index: 1, kind: input, shape index: {}]
  %s2 = inlined_call_operand.vmem [shape: f32[1,128], index: 2, kind: input, shape index: {}]
  %s3 = inlined_call_operand.vmem [shape: bf16[128,128], index: 3, kind: input, shape index: {}]
  %s4 = inlined_call_operand.vmem [shape: f32[1,128], index: 4, kind: input, shape index: {}]
  %s5 = inlined_call_operand.vmem [shape: bf16[128,128], index: 5, kind: input, shape index: {}]
  %s6 = inlined_call_operand.vmem [shape: f32[1,128], index: 6, kind: input, shape index: {}]
  %s7 = inlined_call_operand.vmem [shape: bf16[128,128], index: 7, kind: input, shape index: {}]
  %s8 = inlined_call_operand.vmem [shape: f32[1,128], index: 8, kind: input, shape index: {}]
  %s9 = inlined_call_operand.hbm [shape: f32[8,128], index: 9, kind: output, shape index: {}]
  %s10 = sld [smem:[#allocation0]]
  $region46: #{net_forward.1} parent=0
    _
  %s12 = ssub.s32 1, %s10
  %s13 = scalar_select 0, %s12, %s10
  $region1: #{net_forward.1} parent=0
    #allocation2 [shape = 'u8[4096]{0}', space=vmem, size = 0x1000, scoped, tag = 'output window, operand 0, single buffered']
    #allocation3 [shape = 's32[1]{0}', space=sflag, size = 0x4, scoped, tag = 'scoped memory for net_forward.1']
    %14 = vsyncpa [#allocation3], 0
    // Predicated region
    $region2: #{net_forward.1} parent=1 // pred_check
      _
    $region3: #{net_forward.1} parent=1 // pred_check_branch
      %16 = sbr.rel (0) target = $region5
    $region4: #{net_forward.1} parent=1 // pred_region
      _
    $region5: #{net_forward.1} parent=1 // pred_fallthru
      _
    // Predicated region
    $region6: #{net_forward.1} parent=1 // pred_check
      _
    $region7: #{net_forward.1} parent=1 // pred_check_branch
      %18 = sbr.rel (0) target = $region9
    $region8: #{net_forward.1} parent=1 // pred_region
      _
    $region9: #{net_forward.1} parent=1 // pred_fallthru
      _
    // Predicated region
    $region10: #{net_forward.1} parent=1 // pred_check
      _
    $region11: #{net_forward.1} parent=1 // pred_check_branch
      %20 = sbr.rel (0) target = $region13
    $region12: #{net_forward.1} parent=1 // pred_region
      _
    $region13: #{net_forward.1} parent=1 // pred_fallthru
      _
    // Predicated region
    $region14: #{net_forward.1} parent=1 // pred_check
      _
    $region15: #{net_forward.1} parent=1 // pred_check_branch
      %22 = sbr.rel (0) target = $region17
    $region16: #{net_forward.1} parent=1 // pred_region
      _
    $region17: #{net_forward.1} parent=1 // pred_fallthru
      _
    // Predicated region
    $region18: #{net_forward.1} parent=1 // pred_check
      _
    $region19: #{net_forward.1} parent=1 // pred_check_branch
      %24 = sbr.rel (0) target = $region21
    $region20: #{net_forward.1} parent=1 // pred_region
      _
    $region21: #{net_forward.1} parent=1 // pred_fallthru
      _
    // Predicated region
    $region22: #{net_forward.1} parent=1 // pred_check
      _
    $region23: #{net_forward.1} parent=1 // pred_check_branch
      %26 = sbr.rel (0) target = $region25
    $region24: #{net_forward.1} parent=1 // pred_region
      _
    $region25: #{net_forward.1} parent=1 // pred_fallthru
      _
    // Predicated region
    $region26: #{net_forward.1} parent=1 // pred_check
      _
    $region27: #{net_forward.1} parent=1 // pred_check_branch
      %28 = sbr.rel (0) target = $region29
    $region28: #{net_forward.1} parent=1 // pred_region
      _
    $region29: #{net_forward.1} parent=1 // pred_fallthru
      _
    // Predicated region
    $region30: #{net_forward.1} parent=1 // pred_check
      _
    $region31: #{net_forward.1} parent=1 // pred_check_branch
      %30 = sbr.rel (0) target = $region33
    $region32: #{net_forward.1} parent=1 // pred_region
      _
    $region33: #{net_forward.1} parent=1 // pred_fallthru
      _
    // Predicated region
    $region34: #{net_forward.1} parent=1 // pred_check
      _
    $region35: #{net_forward.1} parent=1 // pred_check_branch
      %32 = sbr.rel (0) target = $region37
    $region36: #{net_forward.1} parent=1 // pred_region
      _
    $region37: #{net_forward.1} parent=1 // pred_fallthru
      _
    %v34 = vld [vmem:[%s0] sm:$0xff]
    %v35 = vld [vmem:[%s0 + $0x8] sm:$0xff]
    %v36 = vld [vmem:[%s0 + $0x10] sm:$0xff]
    %v37 = vld [vmem:[%s0 + $0x18] sm:$0xf]
    %v38 = vld [vmem:[%s1] sm:$0xf]
    %v39 = vld [vmem:[%s1 + $0x4] sm:$0xf]
    %v40 = vld [vmem:[%s1 + $0x8] sm:$0xf]
    %v41 = vld [vmem:[%s1 + $0xc] sm:$0xf]
    %v42 = vld [vmem:[%s1 + $0x10] sm:$0xf]
    %v43 = vld [vmem:[%s1 + $0x14] sm:$0xf]
    %v44 = vld [vmem:[%s1 + $0x18] sm:$0xf]
    %v45 = vld [vmem:[%s1 + $0x1c] sm:$0xf]
    %v46 = vld [vmem:[%s1 + $0x20] sm:$0xf]
    %v47 = vld [vmem:[%s1 + $0x24] sm:$0xf]
    %v48 = vld [vmem:[%s1 + $0x28] sm:$0xf]
    %v49 = vld [vmem:[%s1 + $0x2c] sm:$0xf]
    %v50 = vld [vmem:[%s1 + $0x30] sm:$0xf]
    %v51 = vld [vmem:[%s1 + $0x34] sm:$0xf]
    %v52 = vld [vmem:[%s1 + $0x38] sm:$0xf]
    %v53 = vld [vmem:[%s1 + $0x3c] sm:$0xf]
    %v54 = vld [vmem:[%s1 + $0x40] sm:$0xf]
    %v55 = vld [vmem:[%s1 + $0x44] sm:$0xf]
    %v56 = vld [vmem:[%s1 + $0x48] sm:$0xf]
    %v57 = vld [vmem:[%s1 + $0x4c] sm:$0xf]
    %v58 = vld [vmem:[%s1 + $0x50] sm:$0xf]
    %v59 = vld [vmem:[%s1 + $0x54] sm:$0xf]
    %v60 = vld [vmem:[%s1 + $0x58] sm:$0xf]
    %v61 = vld [vmem:[%s1 + $0x5c] sm:$0xf]
    %v62 = vld [vmem:[%s1 + $0x60] sm:$0xf]
    %v63 = vld [vmem:[%s1 + $0x64] sm:$0xf]
    %v64 = vld [vmem:[%s1 + $0x68] sm:$0xf]
    %v65 = vld [vmem:[%s1 + $0x6c] sm:$0xf]
    %v66 = vld [vmem:[%s1 + $0x70] sm:$0xf]
    %v67 = vld [vmem:[%s1 + $0x74] sm:$0xf]
    %v68 = vld [vmem:[%s1 + $0x78] sm:$0xf]
    %v69 = vld [vmem:[%s1 + $0x7c] sm:$0xf]
    %v70 = vld [vmem:[%s1 + $0x80] sm:$0xf]
    %v71 = vld [vmem:[%s1 + $0x84] sm:$0xf]
    %v72 = vld [vmem:[%s1 + $0x88] sm:$0xf]
    %v73 = vld [vmem:[%s1 + $0x8c] sm:$0xf]
    %v74 = vld [vmem:[%s1 + $0x90] sm:$0xf]
    %v75 = vld [vmem:[%s1 + $0x94] sm:$0xf]
    %v76 = vld [vmem:[%s1 + $0x98] sm:$0xf]
    %v77 = vld [vmem:[%s1 + $0x9c] sm:$0xf]
    %v78 = vld [vmem:[%s1 + $0xa0] sm:$0xf]
    %v79 = vld [vmem:[%s1 + $0xa4] sm:$0xf]
    %v80 = vld [vmem:[%s1 + $0xa8] sm:$0xf]
    %v81 = vld [vmem:[%s1 + $0xac] sm:$0xf]
    %v82 = vld [vmem:[%s1 + $0xb0] sm:$0xf]
    %v83 = vld [vmem:[%s1 + $0xb4] sm:$0xf]
    %v84 = vld [vmem:[%s1 + $0xb8] sm:$0xf]
    %v85 = vld [vmem:[%s1 + $0xbc] sm:$0xf]
    %v86 = vld [vmem:[%s1 + $0xc0] sm:$0xf]
    %v87 = vld [vmem:[%s1 + $0xc4] sm:$0xf]
    %v88 = vld [vmem:[%s1 + $0xc8] sm:$0xf]
    %v89 = vld [vmem:[%s1 + $0xcc] sm:$0xf]
    %v90 = vld [vmem:[%s1 + $0xd0] sm:$0xf]
    %v91 = vld [vmem:[%s1 + $0xd4] sm:$0xf]
    %v92 = vld [vmem:[%s1 + $0xd8] sm:$0xf]
    %v93 = vld [vmem:[%s1 + $0xdc] sm:$0xf]
    %v94 = vld [vmem:[%s1 + $0xe0] sm:$0xf]
    %v95 = vld [vmem:[%s1 + $0xe4] sm:$0xf]
    %v96 = vld [vmem:[%s1 + $0xe8] sm:$0xf]
    %v97 = vld [vmem:[%s1 + $0xec] sm:$0xf]
    %v98 = vld [vmem:[%s1 + $0xf0] sm:$0xf]
    %v99 = vld [vmem:[%s1 + $0xf4] sm:$0xf]
    %v100 = vld [vmem:[%s1 + $0xf8] sm:$0xf]
    %v101 = vld [vmem:[%s1 + $0xfc] sm:$0xf]
    %v102 = vld [vmem:[%s1 + $0x100] sm:$0xf]
    %v103 = vld [vmem:[%s1 + $0x104] sm:$0xf]
    %v104 = vld [vmem:[%s1 + $0x108] sm:$0xf]
    %v105 = vld [vmem:[%s1 + $0x10c] sm:$0xf]
    %v106 = vld [vmem:[%s1 + $0x110] sm:$0xf]
    %v107 = vld [vmem:[%s1 + $0x114] sm:$0xf]
    %v108 = vld [vmem:[%s1 + $0x118] sm:$0xf]
    %v109 = vld [vmem:[%s1 + $0x11c] sm:$0xf]
    %v110 = vld [vmem:[%s1 + $0x120] sm:$0xf]
    %v111 = vld [vmem:[%s1 + $0x124] sm:$0xf]
    %v112 = vld [vmem:[%s1 + $0x128] sm:$0xf]
    %v113 = vld [vmem:[%s1 + $0x12c] sm:$0xf]
    %v114 = vld [vmem:[%s1 + $0x130] sm:$0xf]
    %v115 = vld [vmem:[%s1 + $0x134] sm:$0xf]
    %v116 = vld [vmem:[%s1 + $0x138] sm:$0xf]
    %v117 = vld [vmem:[%s1 + $0x13c] sm:$0xf]
    %v118 = vld [vmem:[%s1 + $0x140] sm:$0xf]
    %v119 = vld [vmem:[%s1 + $0x144] sm:$0xf]
    %v120 = vld [vmem:[%s1 + $0x148] sm:$0xf]
    %v121 = vld [vmem:[%s1 + $0x14c] sm:$0xf]
    %v122 = vld [vmem:[%s1 + $0x150] sm:$0xf]
    %v123 = vld [vmem:[%s1 + $0x154] sm:$0xf]
    %v124 = vld [vmem:[%s1 + $0x158] sm:$0xf]
    %v125 = vld [vmem:[%s1 + $0x15c] sm:$0xf]
    %v126 = vld [vmem:[%s1 + $0x160] sm:$0xf]
    %v127 = vld [vmem:[%s1 + $0x164] sm:$0xf]
    %v128 = vld [vmem:[%s1 + $0x168] sm:$0xf]
    %v129 = vld [vmem:[%s1 + $0x16c] sm:$0xf]
    %v130 = vld [vmem:[%s1 + $0x170] sm:$0xf]
    %v131 = vld [vmem:[%s1 + $0x174] sm:$0xf]
    %v132 = vld [vmem:[%s1 + $0x178] sm:$0xf]
    %v133 = vld [vmem:[%s1 + $0x17c] sm:$0xf]
    %v134 = vld [vmem:[%s1 + $0x180] sm:$0xf]
    %v135 = vld [vmem:[%s1 + $0x184] sm:$0xf]
    %v136 = vld [vmem:[%s2] sm:$0x1]
    %v138 = vperm.slane %v136, 0
    %v144 = vunpack.c.l.b16 %v34
    %v145 = vunpack.c.h.b16 %v34
    %v146 = vunpack.c.l.b16 %v35
    %v147 = vunpack.c.h.b16 %v35
    %v148 = vunpack.c.l.b16 %v36
    %v149 = vunpack.c.h.b16 %v36
    %v150 = vunpack.c.l.b16 %v37
    %v151 = vpack.c.b16 %v144, %v144
    %v152 = vpack.c.b16 %v145, %v145
    %v153 = vpack.c.b16 %v146, %v146
    %v154 = vpack.c.b16 %v147, %v147
    %v155 = vpack.c.b16 %v148, %v148
    %v156 = vpack.c.b16 %v149, %v149
    %v157 = vpack.c.b16 %v150, %v150
    %v262 = vunpack.c.l.b16 %v38
    %v263 = vunpack.c.l.b16 %v39
    %v264 = vunpack.c.l.b16 %v40
    %v265 = vunpack.c.l.b16 %v41
    %v266 = vunpack.c.l.b16 %v42
    %v267 = vunpack.c.l.b16 %v43
    %v268 = vunpack.c.l.b16 %v44
    %v269 = vunpack.c.l.b16 %v45
    %v270 = vunpack.c.l.b16 %v46
    %v271 = vunpack.c.l.b16 %v47
    %v272 = vunpack.c.l.b16 %v48
    %v273 = vunpack.c.l.b16 %v49
    %v274 = vunpack.c.l.b16 %v50
    %v275 = vunpack.c.l.b16 %v51
    %v276 = vunpack.c.l.b16 %v52
    %v277 = vunpack.c.l.b16 %v53
    %v278 = vunpack.c.l.b16 %v54
    %v279 = vunpack.c.l.b16 %v55
    %v280 = vunpack.c.l.b16 %v56
    %v281 = vunpack.c.l.b16 %v57
    %v282 = vunpack.c.l.b16 %v58
    %v283 = vunpack.c.l.b16 %v59
    %v284 = vunpack.c.l.b16 %v60
    %v285 = vunpack.c.l.b16 %v61
    %v286 = vunpack.c.l.b16 %v62
    %v287 = vunpack.c.l.b16 %v63
    %v288 = vunpack.c.l.b16 %v64
    %v289 = vunpack.c.l.b16 %v65
    %v290 = vunpack.c.l.b16 %v66
    %v291 = vunpack.c.l.b16 %v67
    %v292 = vunpack.c.l.b16 %v68
    %v293 = vunpack.c.l.b16 %v69
    %v294 = vunpack.c.l.b16 %v70
    %v295 = vunpack.c.l.b16 %v71
    %v296 = vunpack.c.l.b16 %v72
    %v297 = vunpack.c.l.b16 %v73
    %v298 = vunpack.c.l.b16 %v74
    %v299 = vunpack.c.l.b16 %v75
    %v300 = vunpack.c.l.b16 %v76
    %v301 = vunpack.c.l.b16 %v77
    %v302 = vunpack.c.l.b16 %v78
    %v303 = vunpack.c.l.b16 %v79
    %v304 = vunpack.c.l.b16 %v80
    %v305 = vunpack.c.l.b16 %v81
    %v306 = vunpack.c.l.b16 %v82
    %v307 = vunpack.c.l.b16 %v83
    %v308 = vunpack.c.l.b16 %v84
    %v309 = vunpack.c.l.b16 %v85
    %v310 = vunpack.c.l.b16 %v86
    %v311 = vunpack.c.l.b16 %v87
    %v312 = vunpack.c.l.b16 %v88
    %v313 = vunpack.c.l.b16 %v89
    %v314 = vunpack.c.l.b16 %v90
    %v315 = vunpack.c.l.b16 %v91
    %v316 = vunpack.c.l.b16 %v92
    %v317 = vunpack.c.l.b16 %v93
    %v318 = vunpack.c.l.b16 %v94
    %v319 = vunpack.c.l.b16 %v95
    %v320 = vunpack.c.l.b16 %v96
    %v321 = vunpack.c.l.b16 %v97
    %v322 = vunpack.c.l.b16 %v98
    %v323 = vunpack.c.l.b16 %v99
    %v324 = vunpack.c.l.b16 %v100
    %v325 = vunpack.c.l.b16 %v101
    %v326 = vunpack.c.l.b16 %v102
    %v327 = vunpack.c.l.b16 %v103
    %v328 = vunpack.c.l.b16 %v104
    %v329 = vunpack.c.l.b16 %v105
    %v330 = vunpack.c.l.b16 %v106
    %v331 = vunpack.c.l.b16 %v107
    %v332 = vunpack.c.l.b16 %v108
    %v333 = vunpack.c.l.b16 %v109
    %v334 = vunpack.c.l.b16 %v110
    %v335 = vunpack.c.l.b16 %v111
    %v336 = vunpack.c.l.b16 %v112
    %v337 = vunpack.c.l.b16 %v113
    %v338 = vunpack.c.l.b16 %v114
    %v339 = vunpack.c.l.b16 %v115
    %v340 = vunpack.c.l.b16 %v116
    %v341 = vunpack.c.l.b16 %v117
    %v342 = vunpack.c.l.b16 %v118
    %v343 = vunpack.c.l.b16 %v119
    %v344 = vunpack.c.l.b16 %v120
    %v345 = vunpack.c.l.b16 %v121
    %v346 = vunpack.c.l.b16 %v122
    %v347 = vunpack.c.l.b16 %v123
    %v348 = vunpack.c.l.b16 %v124
    %v349 = vunpack.c.l.b16 %v125
    %v350 = vunpack.c.l.b16 %v126
    %v351 = vunpack.c.l.b16 %v127
    %v352 = vunpack.c.l.b16 %v128
    %v353 = vunpack.c.l.b16 %v129
    %v354 = vunpack.c.l.b16 %v130
    %v355 = vunpack.c.l.b16 %v131
    %v356 = vunpack.c.l.b16 %v132
    %v357 = vunpack.c.l.b16 %v133
    %v358 = vunpack.c.l.b16 %v134
    %v359 = vunpack.c.l.b16 %v135
    %v360 = vpack.c.b16 %v263, %v262
    %v361 = vpack.c.b16 %v265, %v264
    %v362 = vpack.c.b16 %v267, %v266
    %v363 = vpack.c.b16 %v269, %v268
    %v364 = vpack.c.b16 %v271, %v270
    %v365 = vpack.c.b16 %v273, %v272
    %v366 = vpack.c.b16 %v275, %v274
    %v367 = vpack.c.b16 %v277, %v276
    %v368 = vpack.c.b16 %v279, %v278
    %v369 = vpack.c.b16 %v281, %v280
    %v370 = vpack.c.b16 %v283, %v282
    %v371 = vpack.c.b16 %v285, %v284
    %v372 = vpack.c.b16 %v287, %v286
    %v373 = vpack.c.b16 %v289, %v288
    %v374 = vpack.c.b16 %v291, %v290
    %v375 = vpack.c.b16 %v293, %v292
    %v376 = vpack.c.b16 %v295, %v294
    %v377 = vpack.c.b16 %v297, %v296
    %v378 = vpack.c.b16 %v299, %v298
    %v379 = vpack.c.b16 %v301, %v300
    %v380 = vpack.c.b16 %v303, %v302
    %v381 = vpack.c.b16 %v305, %v304
    %v382 = vpack.c.b16 %v307, %v306
    %v383 = vpack.c.b16 %v309, %v308
    %v384 = vpack.c.b16 %v311, %v310
    %v385 = vpack.c.b16 %v313, %v312
    %v386 = vpack.c.b16 %v315, %v314
    %v387 = vpack.c.b16 %v317, %v316
    %v388 = vpack.c.b16 %v319, %v318
    %v389 = vpack.c.b16 %v321, %v320
    %v390 = vpack.c.b16 %v323, %v322
    %v391 = vpack.c.b16 %v325, %v324
    %v392 = vpack.c.b16 %v327, %v326
    %v393 = vpack.c.b16 %v329, %v328
    %v394 = vpack.c.b16 %v331, %v330
    %v395 = vpack.c.b16 %v333, %v332
    %v396 = vpack.c.b16 %v335, %v334
    %v397 = vpack.c.b16 %v337, %v336
    %v398 = vpack.c.b16 %v339, %v338
    %v399 = vpack.c.b16 %v341, %v340
    %v400 = vpack.c.b16 %v343, %v342
    %v401 = vpack.c.b16 %v345, %v344
    %v402 = vpack.c.b16 %v347, %v346
    %v403 = vpack.c.b16 %v349, %v348
    %v404 = vpack.c.b16 %v351, %v350
    %v405 = vpack.c.b16 %v353, %v352
    %v406 = vpack.c.b16 %v355, %v354
    %v407 = vpack.c.b16 %v357, %v356
    %v408 = vpack.c.b16 %v359, %v358
    %vm458 = vcmask 130048
    %v460 = vsel %vm458, %v157, 0
    %462 = vmatpush.bf16.msra.mxu0 %v367
    %463 = vmatpush.bf16.msra.mxu0 %v366
    %464 = vmatpush.bf16.msra.mxu0 %v365
    %465 = vmatpush.bf16.msra.mxu0 %v364
    %466 = vmatpush.bf16.msra.mxu0 %v363
    %467 = vmatpush.bf16.msra.mxu0 %v362
    %468 = vmatpush.bf16.msra.mxu0 %v361
    %469 = vmatpush.bf16.msra.mxu0 %v360
    %470 = vmatmul.bf16.gmra.mxu0 %v151
    %v471 = vpop.f32.mrf.mxu0
    %v472 = vadd.f32 %v138, %v471
    %v473 = vpop.f32.mrf.mxu0
    %474 = vdwg.mxu0
    %475 = vmatpush.bf16.msra.mxu0 %v375
    %476 = vmatpush.bf16.msra.mxu0 %v374
    %477 = vmatpush.bf16.msra.mxu0 %v373
    %478 = vmatpush.bf16.msra.mxu0 %v372
    %479 = vmatpush.bf16.msra.mxu0 %v371
    %480 = vmatpush.bf16.msra.mxu0 %v370
    %481 = vmatpush.bf16.msra.mxu0 %v369
    %482 = vmatpush.bf16.msra.mxu0 %v368
    %483 = vmatmul.bf16.gmra.mxu0 %v152
    %v484 = vpop.f32.mrf.mxu0
    %v485 = vadd.f32 %v472, %v484
    %v486 = vpop.f32.mrf.mxu0
    %487 = vdwg.mxu0
    %488 = vmatpush.bf16.msra.mxu0 %v383
    %489 = vmatpush.bf16.msra.mxu0 %v382
    %490 = vmatpush.bf16.msra.mxu0 %v381
    %491 = vmatpush.bf16.msra.mxu0 %v380
    %492 = vmatpush.bf16.msra.mxu0 %v379
    %493 = vmatpush.bf16.msra.mxu0 %v378
    %494 = vmatpush.bf16.msra.mxu0 %v377
    %495 = vmatpush.bf16.msra.mxu0 %v376
    %496 = vmatmul.bf16.gmra.mxu0 %v153
    %v497 = vpop.f32.mrf.mxu0
    %v498 = vadd.f32 %v485, %v497
    %v499 = vpop.f32.mrf.mxu0
    %500 = vdwg.mxu0
    %501 = vmatpush.bf16.msra.mxu0 %v391
    %502 = vmatpush.bf16.msra.mxu0 %v390
    %503 = vmatpush.bf16.msra.mxu0 %v389
    %504 = vmatpush.bf16.msra.mxu0 %v388
    %505 = vmatpush.bf16.msra.mxu0 %v387
    %506 = vmatpush.bf16.msra.mxu0 %v386
    %507 = vmatpush.bf16.msra.mxu0 %v385
    %508 = vmatpush.bf16.msra.mxu0 %v384
    %509 = vmatmul.bf16.gmra.mxu0 %v154
    %v510 = vpop.f32.mrf.mxu0
    %v511 = vadd.f32 %v498, %v510
    %v512 = vpop.f32.mrf.mxu0
    %513 = vdwg.mxu0
    %514 = vmatpush.bf16.msra.mxu0 %v399
    %515 = vmatpush.bf16.msra.mxu0 %v398
    %516 = vmatpush.bf16.msra.mxu0 %v397
    %517 = vmatpush.bf16.msra.mxu0 %v396
    %518 = vmatpush.bf16.msra.mxu0 %v395
    %519 = vmatpush.bf16.msra.mxu0 %v394
    %520 = vmatpush.bf16.msra.mxu0 %v393
    %521 = vmatpush.bf16.msra.mxu0 %v392
    %522 = vmatmul.bf16.gmra.mxu0 %v155
    %v523 = vpop.f32.mrf.mxu0
    %v524 = vadd.f32 %v511, %v523
    %v525 = vpop.f32.mrf.mxu0
    %526 = vdwg.mxu0
    %527 = vmatpush.bf16.msra.mxu0 %v407
    %528 = vmatpush.bf16.msra.mxu0 %v406
    %529 = vmatpush.bf16.msra.mxu0 %v405
    %530 = vmatpush.bf16.msra.mxu0 %v404
    %531 = vmatpush.bf16.msra.mxu0 %v403
    %532 = vmatpush.bf16.msra.mxu0 %v402
    %533 = vmatpush.bf16.msra.mxu0 %v401
    %534 = vmatpush.bf16.msra.mxu0 %v400
    %535 = vmatmul.bf16.gmra.mxu0 %v156
    %v536 = vpop.f32.mrf.mxu0
    %v537 = vadd.f32 %v524, %v536
    %v538 = vpop.f32.mrf.mxu0
    %539 = vdwg.mxu0
    %540 = vmatpush.bf16.msra.mxu0 0
    %541 = vmatpush.bf16.msra.mxu0 0
    %542 = vmatpush.bf16.msra.mxu0 0
    %543 = vmatpush.bf16.msra.mxu0 0
    %544 = vmatpush.bf16.msra.mxu0 0
    %545 = vmatpush.bf16.msra.mxu0 0
    %546 = vmatpush.bf16.msra.mxu0 0
    %547 = vmatpush.bf16.msra.mxu0 %v408
    %548 = vmatmul.bf16.gmra.mxu0 %v460
    %v549 = vpop.f32.mrf.mxu0
    %v550 = vadd.f32 %v537, %v549
    %v551 = vpop.f32.mrf.mxu0
    %552 = vdwg.mxu0
    %v553 = vmax.f32 %v550, 0.0
    %v554 = vpack.c.bf16 %v553, %v553
    %v555 = vld [vmem:[%s3] sm:$0xf]
    %v556 = vld [vmem:[%s3 + $0x4] sm:$0xf]
    %v557 = vld [vmem:[%s3 + $0x8] sm:$0xf]
    %v558 = vld [vmem:[%s3 + $0xc] sm:$0xf]
    %v559 = vld [vmem:[%s3 + $0x10] sm:$0xf]
    %v560 = vld [vmem:[%s3 + $0x14] sm:$0xf]
    %v561 = vld [vmem:[%s3 + $0x18] sm:$0xf]
    %v562 = vld [vmem:[%s3 + $0x1c] sm:$0xf]
    %v563 = vld [vmem:[%s3 + $0x20] sm:$0xf]
    %v564 = vld [vmem:[%s3 + $0x24] sm:$0xf]
    %v565 = vld [vmem:[%s3 + $0x28] sm:$0xf]
    %v566 = vld [vmem:[%s3 + $0x2c] sm:$0xf]
    %v567 = vld [vmem:[%s3 + $0x30] sm:$0xf]
    %v568 = vld [vmem:[%s3 + $0x34] sm:$0xf]
    %v569 = vld [vmem:[%s3 + $0x38] sm:$0xf]
    %v570 = vld [vmem:[%s3 + $0x3c] sm:$0xf]
    %v571 = vld [vmem:[%s4] sm:$0x1]
    %v573 = vperm.slane %v571, 0
    %v591 = vunpack.c.l.b16 %v555
    %v592 = vunpack.c.l.b16 %v556
    %v593 = vunpack.c.l.b16 %v557
    %v594 = vunpack.c.l.b16 %v558
    %v595 = vunpack.c.l.b16 %v559
    %v596 = vunpack.c.l.b16 %v560
    %v597 = vunpack.c.l.b16 %v561
    %v598 = vunpack.c.l.b16 %v562
    %v599 = vunpack.c.l.b16 %v563
    %v600 = vunpack.c.l.b16 %v564
    %v601 = vunpack.c.l.b16 %v565
    %v602 = vunpack.c.l.b16 %v566
    %v603 = vunpack.c.l.b16 %v567
    %v604 = vunpack.c.l.b16 %v568
    %v605 = vunpack.c.l.b16 %v569
    %v606 = vunpack.c.l.b16 %v570
    %v607 = vpack.c.b16 %v592, %v591
    %v608 = vpack.c.b16 %v594, %v593
    %v609 = vpack.c.b16 %v596, %v595
    %v610 = vpack.c.b16 %v598, %v597
    %v611 = vpack.c.b16 %v600, %v599
    %v612 = vpack.c.b16 %v602, %v601
    %v613 = vpack.c.b16 %v604, %v603
    %v614 = vpack.c.b16 %v606, %v605
    %623 = vmatpush.bf16.msra.mxu0 %v614
    %624 = vmatpush.bf16.msra.mxu0 %v613
    %625 = vmatpush.bf16.msra.mxu0 %v612
    %626 = vmatpush.bf16.msra.mxu0 %v611
    %627 = vmatpush.bf16.msra.mxu0 %v610
    %628 = vmatpush.bf16.msra.mxu0 %v609
    %629 = vmatpush.bf16.msra.mxu0 %v608
    %630 = vmatpush.bf16.msra.mxu0 %v607
    %631 = vmatmul.bf16.gmra.mxu0 %v554
    %v632 = vpop.f32.mrf.mxu0
    %v633 = vadd.f32 %v573, %v632
    %v634 = vpop.f32.mrf.mxu0
    %635 = vdwg.mxu0
    %v636 = vmax.f32 %v633, 0.0
    %v637 = vpack.c.bf16 %v636, %v636
    %v638 = vld [vmem:[%s5] sm:$0xf]
    %v639 = vld [vmem:[%s5 + $0x4] sm:$0xf]
    %v640 = vld [vmem:[%s5 + $0x8] sm:$0xf]
    %v641 = vld [vmem:[%s5 + $0xc] sm:$0xf]
    %v642 = vld [vmem:[%s5 + $0x10] sm:$0xf]
    %v643 = vld [vmem:[%s5 + $0x14] sm:$0xf]
    %v644 = vld [vmem:[%s5 + $0x18] sm:$0xf]
    %v645 = vld [vmem:[%s5 + $0x1c] sm:$0xf]
    %v646 = vld [vmem:[%s5 + $0x20] sm:$0xf]
    %v647 = vld [vmem:[%s5 + $0x24] sm:$0xf]
    %v648 = vld [vmem:[%s5 + $0x28] sm:$0xf]
    %v649 = vld [vmem:[%s5 + $0x2c] sm:$0xf]
    %v650 = vld [vmem:[%s5 + $0x30] sm:$0xf]
    %v651 = vld [vmem:[%s5 + $0x34] sm:$0xf]
    %v652 = vld [vmem:[%s5 + $0x38] sm:$0xf]
    %v653 = vld [vmem:[%s5 + $0x3c] sm:$0xf]
    %v654 = vld [vmem:[%s6] sm:$0x1]
    %v656 = vperm.slane %v654, 0
    %v674 = vunpack.c.l.b16 %v638
    %v675 = vunpack.c.l.b16 %v639
    %v676 = vunpack.c.l.b16 %v640
    %v677 = vunpack.c.l.b16 %v641
    %v678 = vunpack.c.l.b16 %v642
    %v679 = vunpack.c.l.b16 %v643
    %v680 = vunpack.c.l.b16 %v644
    %v681 = vunpack.c.l.b16 %v645
    %v682 = vunpack.c.l.b16 %v646
    %v683 = vunpack.c.l.b16 %v647
    %v684 = vunpack.c.l.b16 %v648
    %v685 = vunpack.c.l.b16 %v649
    %v686 = vunpack.c.l.b16 %v650
    %v687 = vunpack.c.l.b16 %v651
    %v688 = vunpack.c.l.b16 %v652
    %v689 = vunpack.c.l.b16 %v653
    %v690 = vpack.c.b16 %v675, %v674
    %v691 = vpack.c.b16 %v677, %v676
    %v692 = vpack.c.b16 %v679, %v678
    %v693 = vpack.c.b16 %v681, %v680
    %v694 = vpack.c.b16 %v683, %v682
    %v695 = vpack.c.b16 %v685, %v684
    %v696 = vpack.c.b16 %v687, %v686
    %v697 = vpack.c.b16 %v689, %v688
    %706 = vmatpush.bf16.msra.mxu0 %v697
    %707 = vmatpush.bf16.msra.mxu0 %v696
    %708 = vmatpush.bf16.msra.mxu0 %v695
    %709 = vmatpush.bf16.msra.mxu0 %v694
    %710 = vmatpush.bf16.msra.mxu0 %v693
    %711 = vmatpush.bf16.msra.mxu0 %v692
    %712 = vmatpush.bf16.msra.mxu0 %v691
    %713 = vmatpush.bf16.msra.mxu0 %v690
    %714 = vmatmul.bf16.gmra.mxu0 %v637
    %v715 = vpop.f32.mrf.mxu0
    %v716 = vadd.f32 %v656, %v715
    %v717 = vpop.f32.mrf.mxu0
    %718 = vdwg.mxu0
    %v719 = vmax.f32 %v716, 0.0
    %v720 = vpack.c.bf16 %v719, %v719
    %v721 = vld [vmem:[%s7] sm:$0xf]
    %v722 = vld [vmem:[%s7 + $0x4] sm:$0xf]
    %v723 = vld [vmem:[%s7 + $0x8] sm:$0xf]
    %v724 = vld [vmem:[%s7 + $0xc] sm:$0xf]
    %v725 = vld [vmem:[%s7 + $0x10] sm:$0xf]
    %v726 = vld [vmem:[%s7 + $0x14] sm:$0xf]
    %v727 = vld [vmem:[%s7 + $0x18] sm:$0xf]
    %v728 = vld [vmem:[%s7 + $0x1c] sm:$0xf]
    %v729 = vld [vmem:[%s7 + $0x20] sm:$0xf]
    %v730 = vld [vmem:[%s7 + $0x24] sm:$0xf]
    %v731 = vld [vmem:[%s7 + $0x28] sm:$0xf]
    %v732 = vld [vmem:[%s7 + $0x2c] sm:$0xf]
    %v733 = vld [vmem:[%s7 + $0x30] sm:$0xf]
    %v734 = vld [vmem:[%s7 + $0x34] sm:$0xf]
    %v735 = vld [vmem:[%s7 + $0x38] sm:$0xf]
    %v736 = vld [vmem:[%s7 + $0x3c] sm:$0xf]
    %v737 = vld [vmem:[%s8] sm:$0x1]
    %v739 = vperm.slane %v737, 0
    %v757 = vunpack.c.l.b16 %v721
    %v758 = vunpack.c.l.b16 %v722
    %v759 = vunpack.c.l.b16 %v723
    %v760 = vunpack.c.l.b16 %v724
    %v761 = vunpack.c.l.b16 %v725
    %v762 = vunpack.c.l.b16 %v726
    %v763 = vunpack.c.l.b16 %v727
    %v764 = vunpack.c.l.b16 %v728
    %v765 = vunpack.c.l.b16 %v729
    %v766 = vunpack.c.l.b16 %v730
    %v767 = vunpack.c.l.b16 %v731
    %v768 = vunpack.c.l.b16 %v732
    %v769 = vunpack.c.l.b16 %v733
    %v770 = vunpack.c.l.b16 %v734
    %v771 = vunpack.c.l.b16 %v735
    %v772 = vunpack.c.l.b16 %v736
    %v773 = vpack.c.b16 %v758, %v757
    %v774 = vpack.c.b16 %v760, %v759
    %v775 = vpack.c.b16 %v762, %v761
    %v776 = vpack.c.b16 %v764, %v763
    %v777 = vpack.c.b16 %v766, %v765
    %v778 = vpack.c.b16 %v768, %v767
    %v779 = vpack.c.b16 %v770, %v769
    %v780 = vpack.c.b16 %v772, %v771
    %789 = vmatpush.bf16.msra.mxu0 %v780
    %790 = vmatpush.bf16.msra.mxu0 %v779
    %791 = vmatpush.bf16.msra.mxu0 %v778
    %792 = vmatpush.bf16.msra.mxu0 %v777
    %793 = vmatpush.bf16.msra.mxu0 %v776
    %794 = vmatpush.bf16.msra.mxu0 %v775
    %795 = vmatpush.bf16.msra.mxu0 %v774
    %796 = vmatpush.bf16.msra.mxu0 %v773
    %797 = vmatmul.bf16.gmra.mxu0 %v720
    %v798 = vpop.f32.mrf.mxu0
    %v799 = vadd.f32 %v739, %v798
    %v800 = vpop.f32.mrf.mxu0
    %801 = vdwg.mxu0
    %802 = vmax.xlane.f32.xlu0 %v799
    %v803 = vpop.xlane.xlu0 %802
    %v804 = vsub.f32 %v799, %v803
    %v805 = vmul.f32 %v804, 1.442695
    %v806 = vpow.pop %v805
    %807 = vadd.xlane.f32.xlu0 %v806
    %v808 = vpop.xlane.xlu0 %807
    %v809 = vlog2.pop %v808
    %v810 = vmul.f32 %v809, 0.6931472
    %v811 = vadd.f32 %v803, %v810
    %v812 = vsub.f32 %v799, %v811
    %813 = vst [vmem:[#allocation2] sm:$0xff] %v812
    // Predicated region
    $region38: #{net_forward.1} parent=1 // pred_check
      _
    $region39: #{net_forward.1} parent=1 // pred_check_branch
      %815 = sbr.rel (0) target = $region41
    $region40: #{net_forward.1} parent=1 // pred_region
      %817 = vsyncadd [#allocation3], 0
      %s819 = sshll.u32 [#allocation2], 4
      %s820 = int_to_ptr.vmem [resolvable:$true] %s819
      %s821 = sshll.u32 %s9, 4
      %s822 = int_to_ptr.hbm [resolvable:$true] %s821
      %824 = dma.vmem_to_hbm [thread:$0]  %s820, 128, %s822, [#allocation3]
    $region41: #{net_forward.1} parent=1 // pred_fallthru
      _
    // Predicated region
    $region42: #{net_forward.1} parent=1 // pred_check
      _
    $region43: #{net_forward.1} parent=1 // pred_check_branch
      %826 = sbr.rel (0) target = $region45
    $region44: #{net_forward.1} parent=1 // pred_region
      %828 = dma.done [#allocation3], 128
    $region45: #{net_forward.1} parent=1 // pred_fallthru
      _
    %829 = vsyncpa [#allocation3], 1

</llo_original>
